<compile_context>
chip_gen: v7x
topology: tpu7x:2x2x1
jax: 0.10.0
libtpu: 0.0.40
codegen_flags: <defaults>
</compile_context>

<pallas_src>
import jax
import jax.numpy as jnp
from jax.experimental import pallas as pl
from jax.experimental.pallas import tpu as pltpu

D_IN, D_H1, D_H2 = 256, 128, 64
LANE = 128
SUBLANE = 8


def _ins_cls_prime_kernel(x_ref, w1_ref, b1_ref, w23_ref, b23_ref, o_ref):
    # grad_reverse is the identity in the forward pass (only flips grads).
    x = x_ref[...]

    # dc_ip1 + relu  : (tile, 256) @ (256, 128)
    h1 = jnp.dot(x, w1_ref[...], preferred_element_type=jnp.float32) + b1_ref[...]
    h1 = jnp.maximum(h1, 0.0)

    # dc_ip2 (no relu) folded with classifer : (tile, 128) @ (128, c_pad), then sigmoid.
    logits = jnp.dot(h1, w23_ref[...], preferred_element_type=jnp.float32) + b23_ref[...]
    o_ref[...] = jax.nn.sigmoid(logits).astype(o_ref.dtype)


def _round_up(v, m):
    return ((v + m - 1) // m) * m


def ins_cls_prime_forward(x, params, *, tile_n=1024):
    """x: (N, 256) float32.  params: dict of (in, out)-layout weights / (1, out) biases."""
    n, d_in = x.shape
    assert d_in == D_IN
    num_cls = params["w3"].shape[1]

    # Fold layers 2 + 3 (no ReLU between them in the reference forward).
    w23 = params["w2"] @ params["w3"]                     # (128, num_cls)
    b23 = params["b2"] @ params["w3"] + params["b3"]      # (1, num_cls)

    # Lane-dense output: pad the class dimension up to a multiple of 128.
    c_pad = _round_up(max(num_cls, 1), LANE)
    w23p = jnp.zeros((D_H1, c_pad), w23.dtype).at[:, :num_cls].set(w23)
    b23p = jnp.zeros((1, c_pad), b23.dtype).at[:, :num_cls].set(b23)

    # Tile selection: large enough to amortize per-step pipeline overhead,
    # small enough that the grid keeps >= 2 steps for megacore sharding.
    tile = min(int(tile_n), _round_up(max(pl.cdiv(n, 2), SUBLANE), SUBLANE))
    tile = max(SUBLANE, _round_up(tile, SUBLANE))
    n_pad = _round_up(n, tile)
    x_p = x if n_pad == n else jnp.pad(x, ((0, n_pad - n), (0, 0)))

    grid = (n_pad // tile,)
    out = pl.pallas_call(
        _ins_cls_prime_kernel,
        out_shape=jax.ShapeDtypeStruct((n_pad, c_pad), jnp.float32),
        grid_spec=pltpu.PrefetchScalarGridSpec(
            num_scalar_prefetch=0,
            grid=grid,
            in_specs=[
                pl.BlockSpec((tile, D_IN), lambda i: (i, 0)),    # x tile (streams)
                pl.BlockSpec((D_IN, D_H1), lambda i: (0, 0)),    # w1 (256,128), resident
                pl.BlockSpec((1, D_H1), lambda i: (0, 0)),       # b1, resident
                pl.BlockSpec((D_H1, c_pad), lambda i: (0, 0)),   # folded w23, resident
                pl.BlockSpec((1, c_pad), lambda i: (0, 0)),      # folded b23, resident
            ],
            out_specs=pl.BlockSpec((tile, c_pad), lambda i: (i, 0)),
        ),
        compiler_params=pltpu.CompilerParams(
            dimension_semantics=("parallel",)),
    )(x_p, params["w1"], params["b1"], w23p, b23p)

    # Drop row padding and the lane padding of the class dimension.
    return out[:n, :num_cls]


def init_params(key, num_cls):
    """Deterministic init mimicking nn.Linear's U(-1/sqrt(fan_in), 1/sqrt(fan_in))."""
    ks = jax.random.split(key, 6)

    def linear(kw, kb, fan_in, fan_out):
        bound = 1.0 / jnp.sqrt(fan_in)
        # stored already transposed: (in, out)
        w = jax.random.uniform(kw, (fan_in, fan_out), jnp.float32, -bound, bound)
        b = jax.random.uniform(kb, (1, fan_out), jnp.float32, -bound, bound)
        return w, b

    w1, b1 = linear(ks[0], ks[1], D_IN, D_H1)
    w2, b2 = linear(ks[2], ks[3], D_H1, D_H2)
    w3, b3 = linear(ks[4], ks[5], D_H2, num_cls)
    return dict(w1=w1, b1=b1, w2=w2, b2=b2, w3=w3, b3=b3)


def reference_forward(x, p):
    h1 = jnp.maximum(x @ p["w1"] + p["b1"], 0.0)
    h2 = h1 @ p["w2"] + p["b2"]
    return jax.nn.sigmoid(h2 @ p["w3"] + p["b3"])


if __name__ == "__main__":
    key = jax.random.PRNGKey(0)
    k_x, k_p = jax.random.split(key)

    num_cls = 8          # small synthetic class count
    n = 200              # deliberately not a multiple of the tile -> exercises padding
    x = jax.random.normal(k_x, (n, D_IN), jnp.float32)
    params = init_params(k_p, num_cls)

    out = ins_cls_prime_forward(x, params)
    out = jax.block_until_ready(out)

    ref = jax.block_until_ready(reference_forward(x, params))
    assert out.shape == (n, num_cls)
    # Folding layers 2+3 changes only FP associativity; sigmoid outputs match tightly.
    assert jnp.max(jnp.abs(out - ref)) < 5e-5

    print("KERNEL_OK")
</pallas_src>

<mosaic_0001>
module attributes {stable_mosaic.version = 11 : i64} {
  func.func @_ins_cls_prime_kernel(%arg0: i32, %arg1: memref<104x256xf32, #tpu.memory_space<vmem>>, %arg2: memref<256x128xf32, #tpu.memory_space<vmem>>, %arg3: memref<1x128xf32, #tpu.memory_space<vmem>>, %arg4: memref<128x128xf32, #tpu.memory_space<vmem>>, %arg5: memref<1x128xf32, #tpu.memory_space<vmem>>, %arg6: memref<104x128xf32, #tpu.memory_space<vmem>>) attributes {dimension_semantics = [#tpu.dimension_semantics<parallel>], iteration_bounds = array<i64: 2>, scalar_prefetch = 0 : i64, scratch_operands = 0 : i64, tpu.core_type = #tpu.core_type<tc>, window_params = [{transform_indices = @transform_0, window_bounds = array<i64: 104, 256>}, {pipeline_mode = #tpu.pipeline_mode<synchronous>, transform_indices = @transform_1, window_bounds = array<i64: 256, 128>}, {pipeline_mode = #tpu.pipeline_mode<synchronous>, transform_indices = @transform_2, window_bounds = array<i64: 1, 128>}, {pipeline_mode = #tpu.pipeline_mode<synchronous>, transform_indices = @transform_3, window_bounds = array<i64: 128, 128>}, {pipeline_mode = #tpu.pipeline_mode<synchronous>, transform_indices = @transform_4, window_bounds = array<i64: 1, 128>}, {transform_indices = @transform_5, window_bounds = array<i64: 104, 128>}]} {
    %c0 = arith.constant 0 : index
    %c0_0 = arith.constant 0 : index
    %0 = vector.load %arg1[%c0, %c0_0] : memref<104x256xf32, #tpu.memory_space<vmem>>, vector<104x256xf32>
    %c0_1 = arith.constant 0 : index
    %c0_2 = arith.constant 0 : index
    %1 = vector.load %arg2[%c0_1, %c0_2] : memref<256x128xf32, #tpu.memory_space<vmem>>, vector<256x128xf32>
    %cst = arith.constant dense<0.000000e+00> : vector<104x128xf32>
    %2 = tpu.matmul %0, %1, %cst {dimension_numbers = #tpu.dot_dimension_numbers<[1], [0], [0], [1], [0, 0, 1, 1], [], []>} : vector<104x256xf32>, vector<256x128xf32>, vector<104x128xf32> -> vector<104x128xf32>
    %c0_3 = arith.constant 0 : index
    %c0_4 = arith.constant 0 : index
    %3 = vector.load %arg3[%c0_3, %c0_4] : memref<1x128xf32, #tpu.memory_space<vmem>>, vector<1x128xf32>
    %4 = vector.broadcast %3 : vector<1x128xf32> to vector<104x128xf32>
    %5 = arith.addf %2, %4 : vector<104x128xf32>
    %cst_5 = arith.constant 0.000000e+00 : f32
    %6 = vector.broadcast %cst_5 : f32 to vector<104x128xf32>
    %7 = arith.maximumf %5, %6 : vector<104x128xf32>
    %c0_6 = arith.constant 0 : index
    %c0_7 = arith.constant 0 : index
    %8 = vector.load %arg4[%c0_6, %c0_7] : memref<128x128xf32, #tpu.memory_space<vmem>>, vector<128x128xf32>
    %cst_8 = arith.constant dense<0.000000e+00> : vector<104x128xf32>
    %9 = tpu.matmul %7, %8, %cst_8 {dimension_numbers = #tpu.dot_dimension_numbers<[1], [0], [0], [1], [0, 0, 1, 1], [], []>} : vector<104x128xf32>, vector<128x128xf32>, vector<104x128xf32> -> vector<104x128xf32>
    %c0_9 = arith.constant 0 : index
    %c0_10 = arith.constant 0 : index
    %10 = vector.load %arg5[%c0_9, %c0_10] : memref<1x128xf32, #tpu.memory_space<vmem>>, vector<1x128xf32>
    %11 = vector.broadcast %10 : vector<1x128xf32> to vector<104x128xf32>
    %12 = arith.addf %9, %11 : vector<104x128xf32>
    %13 = arith.negf %12 : vector<104x128xf32>
    %14 = math.exp %13 : vector<104x128xf32>
    %cst_11 = arith.constant 1.000000e+00 : f32
    %15 = vector.broadcast %cst_11 : f32 to vector<104x128xf32>
    %16 = arith.addf %15, %14 : vector<104x128xf32>
    %17 = arith.divf %15, %16 : vector<104x128xf32>
    %c0_12 = arith.constant 0 : index
    %c0_13 = arith.constant 0 : index
    %18 = vector.load %arg6[%c0_12, %c0_13] : memref<104x128xf32, #tpu.memory_space<vmem>>, vector<104x128xf32>
    tpu.vector_store %arg6[%c0_12, %c0_13], %17 {strides = array<i32>} : memref<104x128xf32, #tpu.memory_space<vmem>>, vector<104x128xf32>,
    return
  }
  func.func @transform_0(%arg0: i32) -> (i32, i32) {
    %c0_i32 = arith.constant 0 : i32
    %c0_i32_0 = arith.constant 0 : i32
    return %arg0, %c0_i32 : i32, i32
  }
  func.func @transform_1(%arg0: i32) -> (i32, i32) {
    %c0_i32 = arith.constant 0 : i32
    %c0_i32_0 = arith.constant 0 : i32
    %c0_i32_1 = arith.constant 0 : i32
    return %c0_i32, %c0_i32_0 : i32, i32
  }
  func.func @transform_2(%arg0: i32) -> (i32, i32) {
    %c0_i32 = arith.constant 0 : i32
    %c0_i32_0 = arith.constant 0 : i32
    %c0_i32_1 = arith.constant 0 : i32
    return %c0_i32, %c0_i32_0 : i32, i32
  }
  func.func @transform_3(%arg0: i32) -> (i32, i32) {
    %c0_i32 = arith.constant 0 : i32
    %c0_i32_0 = arith.constant 0 : i32
    %c0_i32_1 = arith.constant 0 : i32
    return %c0_i32, %c0_i32_0 : i32, i32
  }
  func.func @transform_4(%arg0: i32) -> (i32, i32) {
    %c0_i32 = arith.constant 0 : i32
    %c0_i32_0 = arith.constant 0 : i32
    %c0_i32_1 = arith.constant 0 : i32
    return %c0_i32, %c0_i32_0 : i32, i32
  }
  func.func @transform_5(%arg0: i32) -> (i32, i32) {
    %c0_i32 = arith.constant 0 : i32
    %c0_i32_0 = arith.constant 0 : i32
    return %arg0, %c0_i32 : i32, i32
  }
}

</mosaic_0001>

<llo_original>
// kernel: tpu_custom_call.1
$region0: #{tpu_custom_call.1}
  #allocation0 [shape = 'u32[]', space=smem, size = 0x4, offset = 0x4, fixed_abs, tag = 'smem constant byte address 0x4 - core index']
  #allocation1 [shape = 'u32[144,128]{1,0:T(1,128)}', space=vmem, size = 0x12000, scoped, tag = 'internal scratch']
  %s0 = inlined_call_operand.hbm [shape: f32[208,256], index: 0, kind: input, shape index: {}]
  %s1 = inlined_call_operand.hbm [shape: f32[256,128], index: 1, kind: input, shape index: {}]
  %s2 = inlined_call_operand.vmem [shape: f32[1,128], index: 2, kind: input, shape index: {}]
  %s3 = inlined_call_operand.hbm [shape: f32[128,128], index: 3, kind: input, shape index: {}]
  %s4 = inlined_call_operand.vmem [shape: f32[1,128], index: 4, kind: input, shape index: {}]
  %s5 = inlined_call_operand.hbm [shape: f32[208,128], index: 5, kind: output, shape index: {}]
  %s6 = sld [smem:[#allocation0]]
  $region65: #{tpu_custom_call.1} parent=0
    _
  %s8 = ssub.s32 1, %s6
  %s9 = scalar_select 0, %s8, %s6
  $region1: #{tpu_custom_call.1} parent=0
    #allocation2 [shape = 'u8[212992]{0}', space=vmem, size = 0x34000, scoped, tag = 'input window, operand 0']
    #allocation3 [shape = 's32[2]{0}', space=sflag, size = 0x8, scoped, tag = 'scoped memory for tpu_custom_call.1']
    #allocation4 [shape = 's32[2]{0}', space=sflag, size = 0x8, scoped, tag = 'scoped memory for tpu_custom_call.1']
    #allocation5 [shape = 'u8[131072]{0}', space=vmem, size = 0x20000, scoped, tag = 'input window, operand 1, single buffered']
    #allocation6 [shape = 's32[1]{0}', space=sflag, size = 0x4, scoped, tag = 'scoped memory for tpu_custom_call.1']
    #allocation7 [shape = 'u8[65536]{0}', space=vmem, size = 0x10000, scoped, tag = 'input window, operand 3, single buffered']
    #allocation8 [shape = 'u8[106496]{0}', space=vmem, size = 0x1a000, scoped, tag = 'output window, operand 0']
    %10 = vsyncpa [#allocation3], 0
    %s11 = scalar_lea.sflag [#allocation3], 1
    %12 = vsyncpa %s11, 0
    %13 = vsyncpa [#allocation6], 0
    %14 = vsyncpa [#allocation4], 0
    %s15 = scalar_lea.sflag [#allocation4], 1
    %16 = vsyncpa %s15, 0
    loop: start=0, step=1, limit=4
    $region2: #{tpu_custom_call.1} parent=1 // loop_pre_header
      _
    $region3: #{tpu_custom_call.1} parent=1 // loop_header
      %s18 = sphi 0, %s22
      %p19 = scmp.ge.s32.totalorder %s18, 4
      %s28 = sphi 0, %s30
      %s31 = sphi 0, %s28
      %s32 = sphi 0, %s31
      %s48 = sphi 0, %s32
      %s52 = sphi 0, %s52
      %s54 = sphi 0, %s52
      %s55 = sphi 0, %s54
      %s69 = sphi 0, %s55
      %s73 = sphi 0, %s73
      %s75 = sphi 0, %s73
      %s76 = sphi 0, %s75
      %s90 = sphi 0, %s76
      %s94 = sphi 0, %s94
      %s96 = sphi 0, %s94
      %s97 = sphi 0, %s96
      %s111 = sphi 0, %s97
      %s115 = sphi 0, %s115
      %s117 = sphi 0, %s115
      %s118 = sphi 0, %s117
      %s132 = sphi 0, %s118
      %s138 = sphi 0, %s140
      %s141 = sphi 0, %s138
      %s142 = sphi 0, %s141
      %s158 = sphi 0, %s142
    $region4: #{tpu_custom_call.1} parent=1 // loop_header_branch
      %21 = sbr.rel (%p19) target = $region8
    $region5: #{tpu_custom_call.1} parent=1 // loop_body
      %s23 = ssub.s32 %s18, 1
      %s24 = ssub.s32 %s18, 2
      %s25 = sadd.s32 %s18, 1
      %s26 = ssub.s32 %s18, %s25
      %p27 = scmp.eq.s32.totalorder %s26, 0
      %s29 = sadd.s32 %s28, 1
      %s30 = scalar_select %p27, %s28, %s29
      %p33 = pneg %p27
      %p34 = scmp.eq.s32.totalorder %s18, 1
      %p35 = por %p33, %p34
      %p36 = scmp.ne.s32.totalorder %s28, %s31
      %p37 = scmp.eq.s32.totalorder %s18, 0
      %p38 = por %p36, %p37
      %p39 = scmp.ne.s32.totalorder %s28, %s31
      %p40 = scmp.eq.s32.totalorder %s23, 1
      %p41 = por %p39, %p40
      %p42 = scmp.ne.s32.totalorder %s31, %s32
      %p43 = scmp.eq.s32.totalorder %s23, 0
      %p44 = por %p42, %p43
      %p45 = scmp.ne.s32.totalorder %s31, %s32
      %p46 = scmp.eq.s32.totalorder %s24, 1
      %p47 = por %p45, %p46
      %p49 = scmp.ne.s32.totalorder %s32, %s48
      %p50 = scmp.eq.s32.totalorder %s24, 0
      %p51 = por %p49, %p50
      %s53 = sadd.s32 %s52, 1
      %p56 = scmp.eq.s32.totalorder %s18, 1
      %p57 = scmp.ne.s32.totalorder %s52, %s54
      %p58 = scmp.eq.s32.totalorder %s18, 0
      %p59 = por %p57, %p58
      %p60 = scmp.ne.s32.totalorder %s52, %s54
      %p61 = scmp.eq.s32.totalorder %s23, 1
      %p62 = por %p60, %p61
      %p63 = scmp.ne.s32.totalorder %s54, %s55
      %p64 = scmp.eq.s32.totalorder %s23, 0
      %p65 = por %p63, %p64
      %p66 = scmp.ne.s32.totalorder %s54, %s55
      %p67 = scmp.eq.s32.totalorder %s24, 1
      %p68 = por %p66, %p67
      %p70 = scmp.ne.s32.totalorder %s55, %s69
      %p71 = scmp.eq.s32.totalorder %s24, 0
      %p72 = por %p70, %p71
      %s74 = sadd.s32 %s73, 1
      %p77 = scmp.eq.s32.totalorder %s18, 1
      %p78 = scmp.ne.s32.totalorder %s73, %s75
      %p79 = scmp.eq.s32.totalorder %s18, 0
      %p80 = por %p78, %p79
      %p81 = scmp.ne.s32.totalorder %s73, %s75
      %p82 = scmp.eq.s32.totalorder %s23, 1
      %p83 = por %p81, %p82
      %p84 = scmp.ne.s32.totalorder %s75, %s76
      %p85 = scmp.eq.s32.totalorder %s23, 0
      %p86 = por %p84, %p85
      %p87 = scmp.ne.s32.totalorder %s75, %s76
      %p88 = scmp.eq.s32.totalorder %s24, 1
      %p89 = por %p87, %p88
      %p91 = scmp.ne.s32.totalorder %s76, %s90
      %p92 = scmp.eq.s32.totalorder %s24, 0
      %p93 = por %p91, %p92
      %s95 = sadd.s32 %s94, 1
      %p98 = scmp.eq.s32.totalorder %s18, 1
      %p99 = scmp.ne.s32.totalorder %s94, %s96
      %p100 = scmp.eq.s32.totalorder %s18, 0
      %p101 = por %p99, %p100
      %p102 = scmp.ne.s32.totalorder %s94, %s96
      %p103 = scmp.eq.s32.totalorder %s23, 1
      %p104 = por %p102, %p103
      %p105 = scmp.ne.s32.totalorder %s96, %s97
      %p106 = scmp.eq.s32.totalorder %s23, 0
      %p107 = por %p105, %p106
      %p108 = scmp.ne.s32.totalorder %s96, %s97
      %p109 = scmp.eq.s32.totalorder %s24, 1
      %p110 = por %p108, %p109
      %p112 = scmp.ne.s32.totalorder %s97, %s111
      %p113 = scmp.eq.s32.totalorder %s24, 0
      %p114 = por %p112, %p113
      %s116 = sadd.s32 %s115, 1
      %p119 = scmp.eq.s32.totalorder %s18, 1
      %p120 = scmp.ne.s32.totalorder %s115, %s117
      %p121 = scmp.eq.s32.totalorder %s18, 0
      %p122 = por %p120, %p121
      %p123 = scmp.ne.s32.totalorder %s115, %s117
      %p124 = scmp.eq.s32.totalorder %s23, 1
      %p125 = por %p123, %p124
      %p126 = scmp.ne.s32.totalorder %s117, %s118
      %p127 = scmp.eq.s32.totalorder %s23, 0
      %p128 = por %p126, %p127
      %p129 = scmp.ne.s32.totalorder %s117, %s118
      %p130 = scmp.eq.s32.totalorder %s24, 1
      %p131 = por %p129, %p130
      %p133 = scmp.ne.s32.totalorder %s118, %s132
      %p134 = scmp.eq.s32.totalorder %s24, 0
      %p135 = por %p133, %p134
      %s136 = ssub.s32 %s18, %s25
      %p137 = scmp.eq.s32.totalorder %s136, 0
      %s139 = sadd.s32 %s138, 1
      %s140 = scalar_select %p137, %s138, %s139
      %p143 = pneg %p137
      %p144 = scmp.eq.s32.totalorder %s18, 1
      %p145 = por %p143, %p144
      %p146 = scmp.ne.s32.totalorder %s138, %s141
      %p147 = scmp.eq.s32.totalorder %s18, 0
      %p148 = por %p146, %p147
      %p149 = scmp.ne.s32.totalorder %s138, %s141
      %p150 = scmp.eq.s32.totalorder %s23, 1
      %p151 = por %p149, %p150
      %p152 = scmp.ne.s32.totalorder %s141, %s142
      %p153 = scmp.eq.s32.totalorder %s23, 0
      %p154 = por %p152, %p153
      %p155 = scmp.ne.s32.totalorder %s141, %s142
      %p156 = scmp.eq.s32.totalorder %s24, 1
      %p157 = por %p155, %p156
      %p159 = scmp.ne.s32.totalorder %s142, %s158
      %p160 = scmp.eq.s32.totalorder %s24, 0
      %p161 = por %p159, %p160
      %p162 = scmp.le.s32.totalorder 1, %s18
      %p163 = scmp.lt.s32.totalorder %s18, 3
      %p164 = pnand %p162, %p163
      %p165 = pneg %p164
      // Predicated region
      $region9: #{tpu_custom_call.1} parent=5 // pred_check
        _
      $region10: #{tpu_custom_call.1} parent=5 // pred_check_branch
        %167 = sbr.rel (%p164) target = $region12
      $region11: #{tpu_custom_call.1} parent=5 // pred_region
        %s168 = ssub.s32 %s18, 1
        // Predicated region
        $region13: #{tpu_custom_call.1} parent=11 // pred_check
          %p169 = pneg %p65
        $region14: #{tpu_custom_call.1} parent=11 // pred_check_branch
          %171 = sbr.rel (%p169) target = $region16
        $region15: #{tpu_custom_call.1} parent=11 // pred_region
          %s173 = ssub.s32 4096, 4096
          %174 = vsyncadd [#allocation6], %s173
          %s175 = sshll.u32 [#allocation5], 4
          %s176 = int_to_ptr.vmem [resolvable:$true] %s175
          %181 = dma.hbm_to_vmem [thread:$0]  %s1, 4096, %s176, [#allocation6], 128, 128, 8
        $region16: #{tpu_custom_call.1} parent=11 // pred_fallthru
          _
        // Predicated region
        $region17: #{tpu_custom_call.1} parent=11 // pred_check
          %p182 = pneg %p86
        $region18: #{tpu_custom_call.1} parent=11 // pred_check_branch
          %184 = sbr.rel (%p182) target = $region20
        $region19: #{tpu_custom_call.1} parent=11 // pred_region
          _
        $region20: #{tpu_custom_call.1} parent=11 // pred_fallthru
          _
        // Predicated region
        $region21: #{tpu_custom_call.1} parent=11 // pred_check
          %p185 = pneg %p107
        $region22: #{tpu_custom_call.1} parent=11 // pred_check_branch
          %187 = sbr.rel (%p185) target = $region24
        $region23: #{tpu_custom_call.1} parent=11 // pred_region
          %s189 = ssub.s32 2048, 2048
          %190 = vsyncadd [#allocation6], %s189
          %s191 = sshll.u32 [#allocation7], 4
          %s192 = int_to_ptr.vmem [resolvable:$true] %s191
          %197 = dma.hbm_to_vmem [thread:$0]  %s3, 2048, %s192, [#allocation6], 128, 128, 8
        $region24: #{tpu_custom_call.1} parent=11 // pred_fallthru
          _
        // Predicated region
        $region25: #{tpu_custom_call.1} parent=11 // pred_check
          %p198 = pneg %p128
        $region26: #{tpu_custom_call.1} parent=11 // pred_check_branch
          %200 = sbr.rel (%p198) target = $region28
        $region27: #{tpu_custom_call.1} parent=11 // pred_region
          _
        $region28: #{tpu_custom_call.1} parent=11 // pred_fallthru
          _
      $region12: #{tpu_custom_call.1} parent=5 // pred_fallthru
        _
      %p201 = scmp.lt.s32.totalorder %s18, 2
      // Predicated region
      $region29: #{tpu_custom_call.1} parent=5 // pred_check
        %p202 = pneg %p201
      $region30: #{tpu_custom_call.1} parent=5 // pred_check_branch
        %204 = sbr.rel (%p202) target = $region32
      $region31: #{tpu_custom_call.1} parent=5 // pred_region
        // Predicated region
        $region33: #{tpu_custom_call.1} parent=31 // pred_check
          %p205 = pneg %p38
        $region34: #{tpu_custom_call.1} parent=31 // pred_check_branch
          %207 = sbr.rel (%p205) target = $region36
        $region35: #{tpu_custom_call.1} parent=31 // pred_region
          %s208 = sand.u32 %s28, 1
          %s209 = scalar_lea.sflag [#allocation3], %s208
          %s210 = sand.u32 %s28, 1
          %s211 = smul.addr %s210, 208
          %s212 = scalar_lea.vmem [#allocation2], %s211
          %s213 = smul.u32 13, %s18
          %s215 = ssub.s32 3328, 3328
          %216 = vsyncadd %s209, %s215
          %s217 = smul.addr %s213, 2
          %s218 = smul.addr %s217, 128
          %s219 = scalar_lea.hbm %s0, %s218
          %s220 = sshll.u32 %s212, 4
          %s221 = int_to_ptr.vmem [resolvable:$true] %s220
          %226 = dma.hbm_to_vmem [thread:$0]  %s219, 3328, %s221, %s209, 256, 256, 16
        $region36: #{tpu_custom_call.1} parent=31 // pred_fallthru
          _
      $region32: #{tpu_custom_call.1} parent=5 // pred_fallthru
        _
      %p227 = scmp.le.s32.totalorder 1, %s18
      %p228 = scmp.lt.s32.totalorder %s18, 3
      %p229 = pnand %p227, %p228
      %p230 = pneg %p229
      // Predicated region
      $region37: #{tpu_custom_call.1} parent=5 // pred_check
        _
      $region38: #{tpu_custom_call.1} parent=5 // pred_check_branch
        %232 = sbr.rel (%p229) target = $region40
      $region39: #{tpu_custom_call.1} parent=5 // pred_region
        %s233 = ssub.s32 %s18, 1
        %s234 = sand.u32 %s31, 1
        %s235 = scalar_lea.sflag [#allocation3], %s234
        %s236 = sand.u32 %s31, 1
        %s237 = smul.addr %s236, 208
        %s238 = scalar_lea.vmem [#allocation2], %s237
        // Predicated region
        $region41: #{tpu_custom_call.1} parent=39 // pred_check
          %p239 = pneg %p44
        $region42: #{tpu_custom_call.1} parent=39 // pred_check_branch
          %241 = sbr.rel (%p239) target = $region44
        $region43: #{tpu_custom_call.1} parent=39 // pred_region
          %242 = dma.done %s235, 3328
        $region44: #{tpu_custom_call.1} parent=39 // pred_fallthru
          _
        // Predicated region
        $region45: #{tpu_custom_call.1} parent=39 // pred_check
          %p243 = pneg %p65
        $region46: #{tpu_custom_call.1} parent=39 // pred_check_branch
          %245 = sbr.rel (%p243) target = $region48
        $region47: #{tpu_custom_call.1} parent=39 // pred_region
          %246 = dma.done [#allocation6], 4096
        $region48: #{tpu_custom_call.1} parent=39 // pred_fallthru
          _
        // Predicated region
        $region49: #{tpu_custom_call.1} parent=39 // pred_check
          %p247 = pneg %p107
        $region50: #{tpu_custom_call.1} parent=39 // pred_check_branch
          %249 = sbr.rel (%p247) target = $region52
        $region51: #{tpu_custom_call.1} parent=39 // pred_region
          %250 = dma.done [#allocation6], 2048
        $region52: #{tpu_custom_call.1} parent=39 // pred_fallthru
          _
        %s251 = sand.u32 %s31, 1
        %s252 = scalar_lea.sflag [#allocation3], %s251
        %s253 = sand.u32 %s31, 1
        %s254 = smul.addr %s253, 208
        %s255 = scalar_lea.vmem [#allocation2], %s254
        %p256 = pneg %p44
        %p257 = pneg %p41
        %p258 = pneg %p65
        %p259 = pneg %p62
        %p260 = pneg %p86
        %p261 = pneg %p83
        %p262 = pneg %p107
        %p263 = pneg %p104
        %p264 = pneg %p128
        %p265 = pneg %p125
        %p266 = pneg %p154
        %p267 = pneg %p151
        %s268 = sand.u32 %s141, 1
        %s269 = scalar_lea.sflag [#allocation4], %s268
        %s270 = sand.u32 %s141, 1
        %s271 = smul.addr %s270, 104
        %s272 = scalar_lea.vmem [#allocation8], %s271
        %s273 = smul.u32 13, %s23
        %s274 = smul.u32 13, %s23
        %v275 = vld [vmem:[%s238] sm:$0xff]
        %v276 = vld [vmem:[%s238 + $0x8] sm:$0xff]
        %v277 = vld [vmem:[%s238 + $0x10] sm:$0xff]
        %v278 = vld [vmem:[%s238 + $0x18] sm:$0xff]
        %v279 = vld [vmem:[%s238 + $0x20] sm:$0xff]
        %v280 = vld [vmem:[%s238 + $0x28] sm:$0xff]
        %v281 = vld [vmem:[%s238 + $0x30] sm:$0xff]
        %v282 = vld [vmem:[%s238 + $0x38] sm:$0xff]
        %v283 = vld [vmem:[%s238 + $0x40] sm:$0xff]
        %v284 = vld [vmem:[%s238 + $0x48] sm:$0xff]
        %v285 = vld [vmem:[%s238 + $0x50] sm:$0xff]
        %v286 = vld [vmem:[%s238 + $0x58] sm:$0xff]
        %v287 = vld [vmem:[%s238 + $0x60] sm:$0xff]
        %v288 = vld [vmem:[%s238 + $0x68] sm:$0xff]
        %v289 = vld [vmem:[%s238 + $0x70] sm:$0xff]
        %v290 = vld [vmem:[%s238 + $0x78] sm:$0xff]
        %v291 = vld [vmem:[%s238 + $0x80] sm:$0xff]
        %v292 = vld [vmem:[%s238 + $0x88] sm:$0xff]
        %v293 = vld [vmem:[%s238 + $0x90] sm:$0xff]
        %v294 = vld [vmem:[%s238 + $0x98] sm:$0xff]
        %v295 = vld [vmem:[%s238 + $0xa0] sm:$0xff]
        %v296 = vld [vmem:[%s238 + $0xa8] sm:$0xff]
        %v297 = vld [vmem:[%s238 + $0xb0] sm:$0xff]
        %v298 = vld [vmem:[%s238 + $0xb8] sm:$0xff]
        %v299 = vld [vmem:[%s238 + $0xc0] sm:$0xff]
        %v300 = vld [vmem:[%s238 + $0xc8] sm:$0xff]
        %v301 = vld [vmem:[#allocation5] sm:$0xff]
        %v302 = vld [vmem:[#allocation5 + $0x8] sm:$0xff]
        %v303 = vld [vmem:[#allocation5 + $0x10] sm:$0xff]
        %v304 = vld [vmem:[#allocation5 + $0x18] sm:$0xff]
        %v305 = vld [vmem:[#allocation5 + $0x20] sm:$0xff]
        %v306 = vld [vmem:[#allocation5 + $0x28] sm:$0xff]
        %v307 = vld [vmem:[#allocation5 + $0x30] sm:$0xff]
        %v308 = vld [vmem:[#allocation5 + $0x38] sm:$0xff]
        %v309 = vld [vmem:[#allocation5 + $0x40] sm:$0xff]
        %v310 = vld [vmem:[#allocation5 + $0x48] sm:$0xff]
        %v311 = vld [vmem:[#allocation5 + $0x50] sm:$0xff]
        %v312 = vld [vmem:[#allocation5 + $0x58] sm:$0xff]
        %v313 = vld [vmem:[#allocation5 + $0x60] sm:$0xff]
        %v314 = vld [vmem:[#allocation5 + $0x68] sm:$0xff]
        %v315 = vld [vmem:[#allocation5 + $0x70] sm:$0xff]
        %v316 = vld [vmem:[#allocation5 + $0x78] sm:$0xff]
        %v317 = vld [vmem:[#allocation5 + $0x80] sm:$0xff]
        %v318 = vld [vmem:[#allocation5 + $0x88] sm:$0xff]
        %v319 = vld [vmem:[#allocation5 + $0x90] sm:$0xff]
        %v320 = vld [vmem:[#allocation5 + $0x98] sm:$0xff]
        %v321 = vld [vmem:[#allocation5 + $0xa0] sm:$0xff]
        %v322 = vld [vmem:[#allocation5 + $0xa8] sm:$0xff]
        %v323 = vld [vmem:[#allocation5 + $0xb0] sm:$0xff]
        %v324 = vld [vmem:[#allocation5 + $0xb8] sm:$0xff]
        %v325 = vld [vmem:[#allocation5 + $0xc0] sm:$0xff]
        %v326 = vld [vmem:[#allocation5 + $0xc8] sm:$0xff]
        %v327 = vld [vmem:[#allocation5 + $0xd0] sm:$0xff]
        %v328 = vld [vmem:[#allocation5 + $0xd8] sm:$0xff]
        %v329 = vld [vmem:[#allocation5 + $0xe0] sm:$0xff]
        %v330 = vld [vmem:[#allocation5 + $0xe8] sm:$0xff]
        %v331 = vld [vmem:[#allocation5 + $0xf0] sm:$0xff]
        %v332 = vld [vmem:[#allocation5 + $0xf8] sm:$0xff]
        %v333 = vld [vmem:[%s2] sm:$0x1]
        %v335 = vlaneseq
        %v336 = vshrl.u32 %v335, 7
        %v337 = vsub.s32 0, %v336
        %v338 = vrot.slane %v333, %v337
        %340 = vmatprep.subr.mxu0 0.0
        %341 = vmatpush1.msra.mxu0 %v301
        %342 = vmatprep.subr.mxu0 0.0
        %343 = vmatpush1.msra.mxu0 %v302
        %344 = vmatprep.subr.mxu0 0.0
        %345 = vmatpush1.msra.mxu0 %v303
        %346 = vmatprep.subr.mxu0 0.0
        %347 = vmatpush1.msra.mxu0 %v304
        %348 = vmatprep.subr.mxu0 0.0
        %349 = vmatpush1.msra.mxu0 %v305
        %350 = vmatprep.subr.mxu0 0.0
        %351 = vmatpush1.msra.mxu0 %v306
        %352 = vmatprep.subr.mxu0 0.0
        %353 = vmatpush1.msra.mxu0 %v307
        %354 = vmatprep.subr.mxu0 0.0
        %355 = vmatpush1.msra.mxu0 %v308
        %356 = vmatprep.subr.mxu0 0.0
        %357 = vmatpush1.msra.mxu0 %v309
        %358 = vmatprep.subr.mxu0 0.0
        %359 = vmatpush1.msra.mxu0 %v310
        %360 = vmatprep.subr.mxu0 0.0
        %361 = vmatpush1.msra.mxu0 %v311
        %362 = vmatprep.subr.mxu0 0.0
        %363 = vmatpush1.msra.mxu0 %v312
        %364 = vmatprep.subr.mxu0 0.0
        %365 = vmatpush1.msra.mxu0 %v313
        %366 = vmatprep.subr.mxu0 0.0
        %367 = vmatpush1.msra.mxu0 %v314
        %368 = vmatprep.subr.mxu0 0.0
        %369 = vmatpush1.msra.mxu0 %v315
        %370 = vmatprep.subr.mxu0 0.0
        %371 = vmatpush1.msra.mxu0 %v316
        %372 = vmatprep.subr.mxu0 0.0
        %373 = vmatpush1.msra.mxu0 %v317
        %374 = vmatprep.subr.mxu0 0.0
        %375 = vmatpush1.msra.mxu0 %v318
        %376 = vmatprep.subr.mxu0 0.0
        %377 = vmatpush1.msra.mxu0 %v319
        %378 = vmatprep.subr.mxu0 0.0
        %379 = vmatpush1.msra.mxu0 %v320
        %380 = vmatprep.subr.mxu0 0.0
        %381 = vmatpush1.msra.mxu0 %v321
        %382 = vmatprep.subr.mxu0 0.0
        %383 = vmatpush1.msra.mxu0 %v322
        %384 = vmatprep.subr.mxu0 0.0
        %385 = vmatpush1.msra.mxu0 %v323
        %386 = vmatprep.subr.mxu0 0.0
        %387 = vmatpush1.msra.mxu0 %v324
        %388 = vmatprep.subr.mxu0 0.0
        %389 = vmatpush1.msra.mxu0 %v325
        %390 = vmatprep.subr.mxu0 0.0
        %391 = vmatpush1.msra.mxu0 %v326
        %392 = vmatprep.subr.mxu0 0.0
        %393 = vmatpush1.msra.mxu0 %v327
        %394 = vmatprep.subr.mxu0 0.0
        %395 = vmatpush1.msra.mxu0 %v328
        %396 = vmatprep.subr.mxu0 0.0
        %397 = vmatpush1.msra.mxu0 %v329
        %398 = vmatprep.subr.mxu0 0.0
        %399 = vmatpush1.msra.mxu0 %v330
        %400 = vmatprep.subr.mxu0 0.0
        %401 = vmatpush1.msra.mxu0 %v331
        %402 = vmatprep.subr.mxu0 0.0
        %403 = vmatpush1.msra.mxu0 %v332
        %404 = vmatprep.mubr.f32.mxu0 %v276
        %405 = vmatmul.mubr.f32.gmra.mrb[0].mxu0 %v275
        %v406 = vpop.f32.mrb[0].mxu0
        %v407 = vadd.f32 %v338, %v406
        %v408 = vpop.f32.mrb[0].mxu0
        %409 = vmatprep.mubr.f32.mxu0 %v278
        %410 = vmatmul.mubr.f32.gmra.mrb[0].mxu0 %v277
        %v411 = vpop.f32.mrb[0].mxu0
        %v412 = vadd.f32 %v338, %v411
        %v413 = vpop.f32.mrb[0].mxu0
        %414 = vmatprep.mubr.f32.mxu0 %v280
        %415 = vmatmul.mubr.f32.gmra.mrb[0].mxu0 %v279
        %v416 = vpop.f32.mrb[0].mxu0
        %v417 = vadd.f32 %v338, %v416
        %v418 = vpop.f32.mrb[0].mxu0
        %419 = vmatprep.mubr.f32.mxu0 %v282
        %420 = vmatmul.mubr.f32.gmra.mrb[0].mxu0 %v281
        %v421 = vpop.f32.mrb[0].mxu0
        %v422 = vadd.f32 %v338, %v421
        %v423 = vpop.f32.mrb[0].mxu0
        %424 = vmatprep.mubr.f32.mxu0 %v284
        %425 = vmatmul.mubr.f32.gmra.mrb[0].mxu0 %v283
        %v426 = vpop.f32.mrb[0].mxu0
        %v427 = vadd.f32 %v338, %v426
        %v428 = vpop.f32.mrb[0].mxu0
        %429 = vmatprep.mubr.f32.mxu0 %v286
        %430 = vmatmul.mubr.f32.gmra.mrb[0].mxu0 %v285
        %v431 = vpop.f32.mrb[0].mxu0
        %v432 = vadd.f32 %v338, %v431
        %v433 = vpop.f32.mrb[0].mxu0
        %434 = vmatprep.mubr.f32.mxu0 %v288
        %435 = vmatmul.mubr.f32.gmra.mrb[0].mxu0 %v287
        %v436 = vpop.f32.mrb[0].mxu0
        %v437 = vadd.f32 %v338, %v436
        %v438 = vpop.f32.mrb[0].mxu0
        %439 = vmatprep.mubr.f32.mxu0 %v290
        %440 = vmatmul.mubr.f32.gmra.mrb[0].mxu0 %v289
        %v441 = vpop.f32.mrb[0].mxu0
        %v442 = vadd.f32 %v338, %v441
        %v443 = vpop.f32.mrb[0].mxu0
        %444 = vmatprep.mubr.f32.mxu0 %v292
        %445 = vmatmul.mubr.f32.gmra.mrb[0].mxu0 %v291
        %v446 = vpop.f32.mrb[0].mxu0
        %v447 = vadd.f32 %v338, %v446
        %v448 = vpop.f32.mrb[0].mxu0
        %449 = vmatprep.mubr.f32.mxu0 %v294
        %450 = vmatmul.mubr.f32.gmra.mrb[0].mxu0 %v293
        %v451 = vpop.f32.mrb[0].mxu0
        %v452 = vadd.f32 %v338, %v451
        %v453 = vpop.f32.mrb[0].mxu0
        %454 = vmatprep.mubr.f32.mxu0 %v296
        %455 = vmatmul.mubr.f32.gmra.mrb[0].mxu0 %v295
        %v456 = vpop.f32.mrb[0].mxu0
        %v457 = vadd.f32 %v338, %v456
        %v458 = vpop.f32.mrb[0].mxu0
        %459 = vmatprep.mubr.f32.mxu0 %v298
        %460 = vmatmul.mubr.f32.gmra.mrb[0].mxu0 %v297
        %v461 = vpop.f32.mrb[0].mxu0
        %v462 = vadd.f32 %v338, %v461
        %v463 = vpop.f32.mrb[0].mxu0
        %464 = vmatprep.mubr.f32.mxu0 %v300
        %465 = vmatmul.mubr.f32.gmra.mrb[0].mxu0 %v299
        %v466 = vpop.f32.mrb[0].mxu0
        %v467 = vadd.f32 %v338, %v466
        %v468 = vpop.f32.mrb[0].mxu0
        %469 = vdwg.mxu0
        %v470 = vmax.f32 %v407, 0.0
        %v471 = vmax.f32 %v412, 0.0
        %v472 = vmax.f32 %v417, 0.0
        %v473 = vmax.f32 %v422, 0.0
        %v474 = vmax.f32 %v427, 0.0
        %v475 = vmax.f32 %v432, 0.0
        %v476 = vmax.f32 %v437, 0.0
        %v477 = vmax.f32 %v442, 0.0
        %v478 = vmax.f32 %v447, 0.0
        %v479 = vmax.f32 %v452, 0.0
        %v480 = vmax.f32 %v457, 0.0
        %v481 = vmax.f32 %v462, 0.0
        %v482 = vmax.f32 %v467, 0.0
        %v483 = vld [vmem:[#allocation7] sm:$0xff]
        %v484 = vld [vmem:[#allocation7 + $0x8] sm:$0xff]
        %v485 = vld [vmem:[#allocation7 + $0x10] sm:$0xff]
        %v486 = vld [vmem:[#allocation7 + $0x18] sm:$0xff]
        %v487 = vld [vmem:[#allocation7 + $0x20] sm:$0xff]
        %v488 = vld [vmem:[#allocation7 + $0x28] sm:$0xff]
        %v489 = vld [vmem:[#allocation7 + $0x30] sm:$0xff]
        %v490 = vld [vmem:[#allocation7 + $0x38] sm:$0xff]
        %v491 = vld [vmem:[#allocation7 + $0x40] sm:$0xff]
        %v492 = vld [vmem:[#allocation7 + $0x48] sm:$0xff]
        %v493 = vld [vmem:[#allocation7 + $0x50] sm:$0xff]
        %v494 = vld [vmem:[#allocation7 + $0x58] sm:$0xff]
        %v495 = vld [vmem:[#allocation7 + $0x60] sm:$0xff]
        %v496 = vld [vmem:[#allocation7 + $0x68] sm:$0xff]
        %v497 = vld [vmem:[#allocation7 + $0x70] sm:$0xff]
        %v498 = vld [vmem:[#allocation7 + $0x78] sm:$0xff]
        %v499 = vld [vmem:[%s4] sm:$0x1]
        %v501 = vlaneseq
        %v502 = vshrl.u32 %v501, 7
        %v503 = vsub.s32 0, %v502
        %v504 = vrot.slane %v499, %v503
        %506 = vmatprep.subr.mxu0 0.0
        %507 = vmatpush1.msra.mxu0 %v483
        %508 = vmatprep.subr.mxu0 0.0
        %509 = vmatpush1.msra.mxu0 %v484
        %510 = vmatprep.subr.mxu0 0.0
        %511 = vmatpush1.msra.mxu0 %v485
        %512 = vmatprep.subr.mxu0 0.0
        %513 = vmatpush1.msra.mxu0 %v486
        %514 = vmatprep.subr.mxu0 0.0
        %515 = vmatpush1.msra.mxu0 %v487
        %516 = vmatprep.subr.mxu0 0.0
        %517 = vmatpush1.msra.mxu0 %v488
        %518 = vmatprep.subr.mxu0 0.0
        %519 = vmatpush1.msra.mxu0 %v489
        %520 = vmatprep.subr.mxu0 0.0
        %521 = vmatpush1.msra.mxu0 %v490
        %522 = vmatprep.subr.mxu0 0.0
        %523 = vmatpush1.msra.mxu0 %v491
        %524 = vmatprep.subr.mxu0 0.0
        %525 = vmatpush1.msra.mxu0 %v492
        %526 = vmatprep.subr.mxu0 0.0
        %527 = vmatpush1.msra.mxu0 %v493
        %528 = vmatprep.subr.mxu0 0.0
        %529 = vmatpush1.msra.mxu0 %v494
        %530 = vmatprep.subr.mxu0 0.0
        %531 = vmatpush1.msra.mxu0 %v495
        %532 = vmatprep.subr.mxu0 0.0
        %533 = vmatpush1.msra.mxu0 %v496
        %534 = vmatprep.subr.mxu0 0.0
        %535 = vmatpush1.msra.mxu0 %v497
        %536 = vmatprep.subr.mxu0 0.0
        %537 = vmatpush1.msra.mxu0 %v498
        %538 = vmatprep.subr.mxu0 0.0
        %539 = vmatpush1.msra.mxu0 0.0
        %540 = vmatprep.subr.mxu0 0.0
        %541 = vmatpush1.msra.mxu0 0.0
        %542 = vmatprep.subr.mxu0 0.0
        %543 = vmatpush1.msra.mxu0 0.0
        %544 = vmatprep.subr.mxu0 0.0
        %545 = vmatpush1.msra.mxu0 0.0
        %546 = vmatprep.subr.mxu0 0.0
        %547 = vmatpush1.msra.mxu0 0.0
        %548 = vmatprep.subr.mxu0 0.0
        %549 = vmatpush1.msra.mxu0 0.0
        %550 = vmatprep.subr.mxu0 0.0
        %551 = vmatpush1.msra.mxu0 0.0
        %552 = vmatprep.subr.mxu0 0.0
        %553 = vmatpush1.msra.mxu0 0.0
        %554 = vmatprep.subr.mxu0 0.0
        %555 = vmatpush1.msra.mxu0 0.0
        %556 = vmatprep.subr.mxu0 0.0
        %557 = vmatpush1.msra.mxu0 0.0
        %558 = vmatprep.subr.mxu0 0.0
        %559 = vmatpush1.msra.mxu0 0.0
        %560 = vmatprep.subr.mxu0 0.0
        %561 = vmatpush1.msra.mxu0 0.0
        %562 = vmatprep.subr.mxu0 0.0
        %563 = vmatpush1.msra.mxu0 0.0
        %564 = vmatprep.subr.mxu0 0.0
        %565 = vmatpush1.msra.mxu0 0.0
        %566 = vmatprep.subr.mxu0 0.0
        %567 = vmatpush1.msra.mxu0 0.0
        %568 = vmatprep.subr.mxu0 0.0
        %569 = vmatpush1.msra.mxu0 0.0
        %570 = vmatprep.mubr.f32.mxu0 0.0
        %571 = vmatmul.mubr.f32.gmra.mrb[0].mxu0 %v470
        %v572 = vpop.f32.mrb[0].mxu0
        %v573 = vadd.f32 %v504, %v572
        %v574 = vpop.f32.mrb[0].mxu0
        %575 = vmatprep.mubr.f32.mxu0 0.0
        %576 = vmatmul.mubr.f32.gmra.mrb[0].mxu0 %v471
        %v577 = vpop.f32.mrb[0].mxu0
        %v578 = vadd.f32 %v504, %v577
        %v579 = vpop.f32.mrb[0].mxu0
        %580 = vmatprep.mubr.f32.mxu0 0.0
        %581 = vmatmul.mubr.f32.gmra.mrb[0].mxu0 %v472
        %v582 = vpop.f32.mrb[0].mxu0
        %v583 = vadd.f32 %v504, %v582
        %v584 = vpop.f32.mrb[0].mxu0
        %585 = vmatprep.mubr.f32.mxu0 0.0
        %586 = vmatmul.mubr.f32.gmra.mrb[0].mxu0 %v473
        %v587 = vpop.f32.mrb[0].mxu0
        %v588 = vadd.f32 %v504, %v587
        %v589 = vpop.f32.mrb[0].mxu0
        %590 = vmatprep.mubr.f32.mxu0 0.0
        %591 = vmatmul.mubr.f32.gmra.mrb[0].mxu0 %v474
        %v592 = vpop.f32.mrb[0].mxu0
        %v593 = vadd.f32 %v504, %v592
        %v594 = vpop.f32.mrb[0].mxu0
        %595 = vmatprep.mubr.f32.mxu0 0.0
        %596 = vmatmul.mubr.f32.gmra.mrb[0].mxu0 %v475
        %v597 = vpop.f32.mrb[0].mxu0
        %v598 = vadd.f32 %v504, %v597
        %v599 = vpop.f32.mrb[0].mxu0
        %600 = vmatprep.mubr.f32.mxu0 0.0
        %601 = vmatmul.mubr.f32.gmra.mrb[0].mxu0 %v476
        %v602 = vpop.f32.mrb[0].mxu0
        %v603 = vadd.f32 %v504, %v602
        %v604 = vpop.f32.mrb[0].mxu0
        %605 = vmatprep.mubr.f32.mxu0 0.0
        %606 = vmatmul.mubr.f32.gmra.mrb[0].mxu0 %v477
        %v607 = vpop.f32.mrb[0].mxu0
        %v608 = vadd.f32 %v504, %v607
        %v609 = vpop.f32.mrb[0].mxu0
        %610 = vmatprep.mubr.f32.mxu0 0.0
        %611 = vmatmul.mubr.f32.gmra.mrb[0].mxu0 %v478
        %v612 = vpop.f32.mrb[0].mxu0
        %v613 = vadd.f32 %v504, %v612
        %v614 = vpop.f32.mrb[0].mxu0
        %615 = vmatprep.mubr.f32.mxu0 0.0
        %616 = vmatmul.mubr.f32.gmra.mrb[0].mxu0 %v479
        %v617 = vpop.f32.mrb[0].mxu0
        %v618 = vadd.f32 %v504, %v617
        %v619 = vpop.f32.mrb[0].mxu0
        %620 = vmatprep.mubr.f32.mxu0 0.0
        %621 = vmatmul.mubr.f32.gmra.mrb[0].mxu0 %v480
        %v622 = vpop.f32.mrb[0].mxu0
        %v623 = vadd.f32 %v504, %v622
        %v624 = vpop.f32.mrb[0].mxu0
        %625 = vmatprep.mubr.f32.mxu0 0.0
        %626 = vmatmul.mubr.f32.gmra.mrb[0].mxu0 %v481
        %v627 = vpop.f32.mrb[0].mxu0
        %v628 = vadd.f32 %v504, %v627
        %v629 = vpop.f32.mrb[0].mxu0
        %630 = vmatprep.mubr.f32.mxu0 0.0
        %631 = vmatmul.mubr.f32.gmra.mrb[0].mxu0 %v482
        %v632 = vpop.f32.mrb[0].mxu0
        %v633 = vadd.f32 %v504, %v632
        %v634 = vpop.f32.mrb[0].mxu0
        %635 = vdwg.mxu0
        %v636 = vxor.u32 %v573, 2147483648
        %v637 = vxor.u32 %v578, 2147483648
        %v638 = vxor.u32 %v583, 2147483648
        %v639 = vxor.u32 %v588, 2147483648
        %v640 = vxor.u32 %v593, 2147483648
        %v641 = vxor.u32 %v598, 2147483648
        %v642 = vxor.u32 %v603, 2147483648
        %v643 = vxor.u32 %v608, 2147483648
        %v644 = vxor.u32 %v613, 2147483648
        %v645 = vxor.u32 %v618, 2147483648
        %v646 = vxor.u32 %v623, 2147483648
        %v647 = vxor.u32 %v628, 2147483648
        %v648 = vxor.u32 %v633, 2147483648
        %v649 = vmul.f32 %v636, 1.442695
        %v650 = vpow.pop %v649
        %v651 = vmul.f32 %v637, 1.442695
        %v652 = vpow.pop %v651
        %v653 = vmul.f32 %v638, 1.442695
        %v654 = vpow.pop %v653
        %v655 = vmul.f32 %v639, 1.442695
        %v656 = vpow.pop %v655
        %v657 = vmul.f32 %v640, 1.442695
        %v658 = vpow.pop %v657
        %v659 = vmul.f32 %v641, 1.442695
        %v660 = vpow.pop %v659
        %v661 = vmul.f32 %v642, 1.442695
        %v662 = vpow.pop %v661
        %v663 = vmul.f32 %v643, 1.442695
        %v664 = vpow.pop %v663
        %v665 = vmul.f32 %v644, 1.442695
        %v666 = vpow.pop %v665
        %v667 = vmul.f32 %v645, 1.442695
        %v668 = vpow.pop %v667
        %v669 = vmul.f32 %v646, 1.442695
        %v670 = vpow.pop %v669
        %v671 = vmul.f32 %v647, 1.442695
        %v672 = vpow.pop %v671
        %v673 = vmul.f32 %v648, 1.442695
        %v674 = vpow.pop %v673
        %v675 = vadd.f32 %v650, 1.0
        %v676 = vadd.f32 %v652, 1.0
        %v677 = vadd.f32 %v654, 1.0
        %v678 = vadd.f32 %v656, 1.0
        %v679 = vadd.f32 %v658, 1.0
        %v680 = vadd.f32 %v660, 1.0
        %v681 = vadd.f32 %v662, 1.0
        %v682 = vadd.f32 %v664, 1.0
        %v683 = vadd.f32 %v666, 1.0
        %v684 = vadd.f32 %v668, 1.0
        %v685 = vadd.f32 %v670, 1.0
        %v686 = vadd.f32 %v672, 1.0
        %v687 = vadd.f32 %v674, 1.0
        %v688 = vrcp.pop %v675
        %v689 = vmul.f32 1.0, %v688
        %v690 = vrcp.pop %v676
        %v691 = vmul.f32 1.0, %v690
        %v692 = vrcp.pop %v677
        %v693 = vmul.f32 1.0, %v692
        %v694 = vrcp.pop %v678
        %v695 = vmul.f32 1.0, %v694
        %v696 = vrcp.pop %v679
        %v697 = vmul.f32 1.0, %v696
        %v698 = vrcp.pop %v680
        %v699 = vmul.f32 1.0, %v698
        %v700 = vrcp.pop %v681
        %v701 = vmul.f32 1.0, %v700
        %v702 = vrcp.pop %v682
        %v703 = vmul.f32 1.0, %v702
        %v704 = vrcp.pop %v683
        %v705 = vmul.f32 1.0, %v704
        %v706 = vrcp.pop %v684
        %v707 = vmul.f32 1.0, %v706
        %v708 = vrcp.pop %v685
        %v709 = vmul.f32 1.0, %v708
        %v710 = vrcp.pop %v686
        %v711 = vmul.f32 1.0, %v710
        %v712 = vrcp.pop %v687
        %v713 = vmul.f32 1.0, %v712
        %714 = vst [vmem:[%s272] sm:$0xff] %v689
        %715 = vst [vmem:[%s272 + $0x8] sm:$0xff] %v691
        %716 = vst [vmem:[%s272 + $0x10] sm:$0xff] %v693
        %717 = vst [vmem:[%s272 + $0x18] sm:$0xff] %v695
        %718 = vst [vmem:[%s272 + $0x20] sm:$0xff] %v697
        %719 = vst [vmem:[%s272 + $0x28] sm:$0xff] %v699
        %720 = vst [vmem:[%s272 + $0x30] sm:$0xff] %v701
        %721 = vst [vmem:[%s272 + $0x38] sm:$0xff] %v703
        %722 = vst [vmem:[%s272 + $0x40] sm:$0xff] %v705
        %723 = vst [vmem:[%s272 + $0x48] sm:$0xff] %v707
        %724 = vst [vmem:[%s272 + $0x50] sm:$0xff] %v709
        %725 = vst [vmem:[%s272 + $0x58] sm:$0xff] %v711
        %726 = vst [vmem:[%s272 + $0x60] sm:$0xff] %v713
        %s727 = sand.u32 %s141, 1
        %s728 = scalar_lea.sflag [#allocation4], %s727
        %s729 = sand.u32 %s141, 1
        %s730 = smul.addr %s729, 104
        %s731 = scalar_lea.vmem [#allocation8], %s730
        // Predicated region
        $region53: #{tpu_custom_call.1} parent=39 // pred_check
          %p732 = pneg %p151
        $region54: #{tpu_custom_call.1} parent=39 // pred_check_branch
          %734 = sbr.rel (%p732) target = $region56
        $region55: #{tpu_custom_call.1} parent=39 // pred_region
          %s735 = smul.u32 13, %s23
          %s737 = ssub.s32 1664, 1664
          %738 = vsyncadd %s728, %s737
          %s739 = smul.addr %s735, 128
          %s740 = scalar_lea.hbm %s5, %s739
          %s741 = sshll.u32 %s731, 4
          %s742 = int_to_ptr.vmem [resolvable:$true] %s741
          %747 = dma.vmem_to_hbm [thread:$0]  %s742, 1664, %s740, %s728, 128, 128, 8
        $region56: #{tpu_custom_call.1} parent=39 // pred_fallthru
          _
      $region40: #{tpu_custom_call.1} parent=5 // pred_fallthru
        _
      %p748 = scmp.le.s32.totalorder 2, %s18
      // Predicated region
      $region57: #{tpu_custom_call.1} parent=5 // pred_check
        %p749 = pneg %p748
      $region58: #{tpu_custom_call.1} parent=5 // pred_check_branch
        %751 = sbr.rel (%p749) target = $region60
      $region59: #{tpu_custom_call.1} parent=5 // pred_region
        %s752 = ssub.s32 %s18, 2
        // Predicated region
        $region61: #{tpu_custom_call.1} parent=59 // pred_check
          %p753 = pneg %p157
        $region62: #{tpu_custom_call.1} parent=59 // pred_check_branch
          %755 = sbr.rel (%p753) target = $region64
        $region63: #{tpu_custom_call.1} parent=59 // pred_region
          %s756 = sand.u32 %s142, 1
          %s757 = scalar_lea.sflag [#allocation4], %s756
          %s758 = sand.u32 %s142, 1
          %s759 = smul.addr %s758, 104
          %s760 = scalar_lea.vmem [#allocation8], %s759
          %761 = dma.done %s757, 1664
        $region64: #{tpu_custom_call.1} parent=59 // pred_fallthru
          _
      $region60: #{tpu_custom_call.1} parent=5 // pred_fallthru
        _
    $region6: #{tpu_custom_call.1} parent=1 // loop_footer
      %s22 = sadd.s32 1, %s18
    $region7: #{tpu_custom_call.1} parent=1 // loop_footer_branch
      %17 = sbr.rel target = $region3
    $region8: #{tpu_custom_call.1} parent=1 // loop_exit
      _
    %762 = vsyncpa [#allocation3], 1
    %s763 = scalar_lea.sflag [#allocation3], 1
    %764 = vsyncpa %s763, 1
    %765 = vsyncpa [#allocation6], 1
    %766 = vsyncpa [#allocation4], 1
    %s767 = scalar_lea.sflag [#allocation4], 1
    %768 = vsyncpa %s767, 1

</llo_original>
